<compile_context>
chip_gen: v7x
topology: tpu7x:2x2x1
jax: 0.10.0
libtpu: 0.0.40
codegen_flags: <defaults>
</compile_context>

<pallas_src>
import functools
import math

import jax
import jax.numpy as jnp
from jax.experimental import pallas as pl
from jax.experimental.pallas import tpu as pltpu


# ----------------------------------------------------------------------------
# small tiling helpers
# ----------------------------------------------------------------------------
def _row_tile(rows, lane, max_block_bytes=1 << 20):
    """Largest divisor of `rows` that is a multiple of 8 and keeps a
    (tile, lane) f32 block under ~1 MiB.  Falls back to the full extent
    (always a legal block shape)."""
    cap = max(8, max_block_bytes // (4 * lane))
    for t in range(min(cap, rows), 0, -1):
        if rows % t == 0 and t % 8 == 0:
            return t
    return rows


def _pick_lane_dense_view(total, feat):
    """Factor total (= N*C) as (rows, lane) with lane a large multiple of 128
    (full vector-store width) and rows a multiple of 8 where possible."""
    for lane in (4096, 2048, 1024, 512, 256, 128):
        if total % lane == 0 and (total // lane) % 8 == 0:
            return total // lane, lane
    for lane in (4096, 2048, 1024, 512, 256, 128):
        if total % lane == 0:
            return total // lane, lane
    return total // feat, feat  # last resort: lane = C


# ----------------------------------------------------------------------------
# RoPE (fused, interleaved, lane-dense)
# ----------------------------------------------------------------------------
def build_rope_tables(H, W, C, base=10000.0):
    """RoPE.__init__ math.  Returns
       (cos, sin)   : (H, W, C//2)   -- for the pure-JAX reference
       (cos_i, sin_i): (H*W*C,) each -- interleaved tables for the fused kernel:
           cos_i[.., 2k] = cos_i[.., 2k+1] = cos(angle_k)
           sin_i[.., 2k] = -sin(angle_k), sin_i[.., 2k+1] = +sin(angle_k)
       so that out = x * cos_i + swap_pairs(x) * sin_i reproduces the complex
       multiply on the interleaved (re, im) feature layout."""
    k_max = C // 4  # feature_dim // (2 * len(channel_dims)), channel_dims=(H, W)
    theta = 1.0 / (base ** (jnp.arange(k_max, dtype=jnp.float32) / k_max))
    gh, gw = jnp.meshgrid(jnp.arange(H, dtype=jnp.float32),
                          jnp.arange(W, dtype=jnp.float32), indexing="ij")
    angles = jnp.concatenate([gh[..., None] * theta, gw[..., None] * theta], axis=-1)
    cos, sin = jnp.cos(angles), jnp.sin(angles)
    cos_i = jnp.stack([cos, cos], axis=-1).reshape(H * W * C)
    sin_i = jnp.stack([-sin, sin], axis=-1).reshape(H * W * C)
    return (cos, sin), (cos_i, sin_i)


def _rope_kernel(x_ref, cos_ref, sin_ref, o_ref):
    # x block: (1, tile_r, L); cos/sin block: (tile_r, L).  Pairs (2k, 2k+1) are
    # adjacent lanes, so the neighbour swap is two static lane shifts + select
    # (VPU/XLU work only, no extra HBM traffic).
    x = x_ref[...].astype(jnp.float32)
    c = cos_ref[...]
    s = sin_ref[...]
    lane = jax.lax.broadcasted_iota(jnp.int32, x.shape, dimension=x.ndim - 1)
    left = jnp.roll(x, -1, axis=-1)    # x[i+1] at position i
    right = jnp.roll(x, 1, axis=-1)    # x[i-1] at position i
    swapped = jnp.where((lane & 1) == 0, left, right)
    o_ref[...] = (x * c + swapped * s).astype(o_ref.dtype)


def rope_pallas(x, cos_i, sin_i):
    """x: (B, N, C); cos_i/sin_i: (N*C,) interleaved tables.  Returns (B, N, C)."""
    B, N, C = x.shape
    total = N * C
    R, L = _pick_lane_dense_view(total, C)
    tile_r = _row_tile(R, L)
    xr = x.reshape(B, R, L)
    cr = cos_i.reshape(R, L)
    sr = sin_i.reshape(R, L)
    # tile axis outer ("parallel" -> megacore sharding on v7x), batch inner so
    # the same cos/sin block is reused for consecutive batch steps (no re-DMA).
    grid = (R // tile_r, B)
    out = pl.pallas_call(
        _rope_kernel,
        out_shape=jax.ShapeDtypeStruct((B, R, L), x.dtype),
        grid=grid,
        in_specs=[
            pl.BlockSpec((1, tile_r, L), lambda j, b: (b, j, 0)),
            pl.BlockSpec((tile_r, L), lambda j, b: (j, 0)),
            pl.BlockSpec((tile_r, L), lambda j, b: (j, 0)),
        ],
        out_specs=pl.BlockSpec((1, tile_r, L), lambda j, b: (b, j, 0)),
        compiler_params=pltpu.CompilerParams(
            dimension_semantics=("parallel", "arbitrary")),
    )(xr, cr, sr)
    return out.reshape(B, N, C)


# ----------------------------------------------------------------------------
# LayerNorm
# ----------------------------------------------------------------------------
def _layernorm_kernel(x_ref, g_ref, b_ref, o_ref):
    x = x_ref[...].astype(jnp.float32)
    mean = jnp.mean(x, axis=-1, keepdims=True)
    xc = x - mean
    var = jnp.mean(xc * xc, axis=-1, keepdims=True)
    y = xc * jax.lax.rsqrt(var + 1e-5)
    o_ref[...] = (y * g_ref[...] + b_ref[...]).astype(o_ref.dtype)


def layernorm_pallas(x2d, gamma, beta):
    M, C = x2d.shape
    tile_m = _row_tile(M, C)
    return pl.pallas_call(
        _layernorm_kernel,
        out_shape=jax.ShapeDtypeStruct((M, C), x2d.dtype),
        grid=(M // tile_m,),
        in_specs=[
            pl.BlockSpec((tile_m, C), lambda i: (i, 0)),
            pl.BlockSpec((1, C), lambda i: (0, 0)),
            pl.BlockSpec((1, C), lambda i: (0, 0)),
        ],
        out_specs=pl.BlockSpec((tile_m, C), lambda i: (i, 0)),
        compiler_params=pltpu.CompilerParams(dimension_semantics=("parallel",)),
    )(x2d, gamma.reshape(1, C), beta.reshape(1, C))


# ----------------------------------------------------------------------------
# Linear (+ fused activation)
# ----------------------------------------------------------------------------
def _gelu_tanh(x):
    # TODO(synk): nn.GELU default is the exact erf form; tanh approximation is
    # used here for portable Mosaic lowering (max abs deviation ~3e-3).
    c = math.sqrt(2.0 / math.pi)
    return 0.5 * x * (1.0 + jnp.tanh(c * (x + 0.044715 * x * x * x)))


def _linear_kernel(x_ref, w_ref, b_ref, o_ref, *, act):
    x = x_ref[...].astype(jnp.float32)
    w = w_ref[...].astype(jnp.float32)
    y = jnp.dot(x, w, preferred_element_type=jnp.float32) + b_ref[...].astype(jnp.float32)
    if act == "silu":
        y = y * (1.0 / (1.0 + jnp.exp(-y)))
    elif act == "gelu":
        y = _gelu_tanh(y)
    elif act == "elu1":                       # ELU(alpha=1) + 1
        y = jnp.where(y > 0, y + 1.0, jnp.exp(y))
    o_ref[...] = y.astype(o_ref.dtype)


def linear_pallas(x2d, w, b, act=None):
    M, K = x2d.shape
    _, N = w.shape
    tile_m = _row_tile(M, max(K, N))
    return pl.pallas_call(
        functools.partial(_linear_kernel, act=act),
        out_shape=jax.ShapeDtypeStruct((M, N), x2d.dtype),
        grid=(M // tile_m,),
        in_specs=[
            pl.BlockSpec((tile_m, K), lambda i: (i, 0)),
            pl.BlockSpec((K, N), lambda i: (0, 0)),   # weights stay VMEM-resident
            pl.BlockSpec((1, N), lambda i: (0, 0)),
        ],
        out_specs=pl.BlockSpec((tile_m, N), lambda i: (i, 0)),
        compiler_params=pltpu.CompilerParams(dimension_semantics=("parallel",)),
    )(x2d, w, b.reshape(1, N))


# ----------------------------------------------------------------------------
# Linear-attention core (per batch*head)
# ----------------------------------------------------------------------------
def _linattn_kernel(q_ref, k_ref, qr_ref, kr_ref, v_ref, o_ref, *, n):
    q = q_ref[0].astype(jnp.float32)      # (N, d)
    k = k_ref[0].astype(jnp.float32)
    qr = qr_ref[0].astype(jnp.float32)
    kr = kr_ref[0].astype(jnp.float32)
    v = v_ref[0].astype(jnp.float32)
    mean_k = jnp.mean(k, axis=0, keepdims=True)                        # (1, d)
    z = 1.0 / (jnp.sum(q * mean_k, axis=-1, keepdims=True) + 1e-6)     # (N, 1)
    scale = n ** -0.5
    kv = jnp.dot(jnp.transpose(kr) * scale, v * scale,
                 preferred_element_type=jnp.float32)                   # (d, d)
    out = jnp.dot(qr, kv, preferred_element_type=jnp.float32) * z      # (N, d)
    o_ref[0] = out.astype(o_ref.dtype)


def linattn_core_pallas(q, k, qr, kr, v):
    """All inputs (B*num_heads, N, d); one grid step per (batch, head)."""
    G, N, d = q.shape
    spec = pl.BlockSpec((1, N, d), lambda i: (i, 0, 0))
    # TODO(synk): for very long sequences, tile N with a kv/z accumulator instead
    # of holding full (N, d) operands per step.
    return pl.pallas_call(
        functools.partial(_linattn_kernel, n=N),
        out_shape=jax.ShapeDtypeStruct((G, N, d), q.dtype),
        grid=(G,),
        in_specs=[spec] * 5,
        out_specs=spec,
        compiler_params=pltpu.CompilerParams(dimension_semantics=("parallel",)),
    )(q, k, qr, kr, v)


# ----------------------------------------------------------------------------
# depthwise 3x3 conv (left to XLA)
# ----------------------------------------------------------------------------
def depthwise_conv3x3(x_bnc, H, W, w, b):
    # TODO(synk): 3x3 depthwise conv kept in XLA (lax.conv_general_dilated);
    # a Pallas shift-and-accumulate version is possible but not worth the risk here.
    B, N, C = x_bnc.shape
    x = x_bnc.reshape(B, H, W, C).transpose(0, 3, 1, 2)      # NCHW
    y = jax.lax.conv_general_dilated(
        x, w, window_strides=(1, 1), padding=((1, 1), (1, 1)),
        dimension_numbers=("NCHW", "OIHW", "NCHW"), feature_group_count=C)
    y = y + b.reshape(1, C, 1, 1)
    return y.transpose(0, 2, 3, 1).reshape(B, N, C)


# ----------------------------------------------------------------------------
# Full MLLABlock forward (Pallas path)
# ----------------------------------------------------------------------------
def mlla_block_pallas(x, p, rope_tables, H, W, num_heads):
    B, L, C = x.shape
    N = L
    d = C // num_heads
    cos_i, sin_i = rope_tables

    x = x + depthwise_conv3x3(x, H, W, p["cpe1_w"], p["cpe1_b"])
    shortcut = x

    xn = layernorm_pallas(x.reshape(B * L, C), p["norm1_g"], p["norm1_b"])
    act_res = linear_pallas(xn, p["act_proj_w"], p["act_proj_b"], act="silu").reshape(B, L, C)
    xi = linear_pallas(xn, p["in_proj_w"], p["in_proj_b"]).reshape(B, L, C)
    xi = jax.nn.silu(depthwise_conv3x3(xi, H, W, p["dwc_w"], p["dwc_b"]))

    # ---- LinearAttention (qk proj + ELU+1 fused, RoPE fused, per-head core) ----
    xi2 = xi.reshape(B * L, C)
    q = linear_pallas(xi2, p["wq"], p["bq"], act="elu1").reshape(B, N, C)
    k = linear_pallas(xi2, p["wk"], p["bk"], act="elu1").reshape(B, N, C)
    v = xi
    qr = rope_pallas(q, cos_i, sin_i)
    kr = rope_pallas(k, cos_i, sin_i)

    def heads(t):
        return t.reshape(B, N, num_heads, d).transpose(0, 2, 1, 3).reshape(B * num_heads, N, d)

    attn = linattn_core_pallas(*map(heads, (q, k, qr, kr, v)))
    attn = attn.reshape(B, num_heads, N, d).transpose(0, 2, 1, 3).reshape(B, N, C)
    attn = attn + depthwise_conv3x3(v, H, W, p["lepe_w"], p["lepe_b"])

    y = linear_pallas((attn * act_res).reshape(B * L, C),
                      p["out_proj_w"], p["out_proj_b"]).reshape(B, L, C)
    x = shortcut + y
    x = x + depthwise_conv3x3(x, H, W, p["cpe2_w"], p["cpe2_b"])

    xn2 = layernorm_pallas(x.reshape(B * L, C), p["norm2_g"], p["norm2_b"])
    h = linear_pallas(xn2, p["fc1_w"], p["fc1_b"], act="gelu")
    y2 = linear_pallas(h, p["fc2_w"], p["fc2_b"]).reshape(B, L, C)
    return x + y2


# ----------------------------------------------------------------------------
# Pure-JAX reference (mirrors the PyTorch module)
# ----------------------------------------------------------------------------
def _layernorm_ref(x, g, b, eps=1e-5):
    mean = jnp.mean(x, axis=-1, keepdims=True)
    var = jnp.mean((x - mean) ** 2, axis=-1, keepdims=True)
    return (x - mean) * jax.lax.rsqrt(var + eps) * g + b


def rope_reference(x, cos, sin):
    # x: (B, H, W, C); cos/sin: (H, W, C//2)  -- torch view_as_complex semantics
    B, H, W, C = x.shape
    xp = x.reshape(B, H, W, C // 2, 2)
    xr, xi = xp[..., 0], xp[..., 1]
    return jnp.stack([cos * xr - sin * xi, sin * xr + cos * xi], axis=-1).reshape(B, H, W, C)


def mlla_block_reference(x, p, rope_cs, H, W, num_heads):
    B, L, C = x.shape
    N = L
    d = C // num_heads
    cos, sin = rope_cs

    x = x + depthwise_conv3x3(x, H, W, p["cpe1_w"], p["cpe1_b"])
    shortcut = x
    xn = _layernorm_ref(x, p["norm1_g"], p["norm1_b"])
    act_res = jax.nn.silu(xn @ p["act_proj_w"] + p["act_proj_b"])
    xi = xn @ p["in_proj_w"] + p["in_proj_b"]
    xi = jax.nn.silu(depthwise_conv3x3(xi, H, W, p["dwc_w"], p["dwc_b"]))

    q = jax.nn.elu(xi @ p["wq"] + p["bq"]) + 1.0
    k = jax.nn.elu(xi @ p["wk"] + p["bk"]) + 1.0
    v = xi
    qr = rope_reference(q.reshape(B, H, W, C), cos, sin).reshape(B, N, C)
    kr = rope_reference(k.reshape(B, H, W, C), cos, sin).reshape(B, N, C)

    def heads(t):
        return t.reshape(B, N, num_heads, d).transpose(0, 2, 1, 3)

    qh, kh, qrh, krh, vh = map(heads, (q, k, qr, kr, v))
    z = 1.0 / (jnp.einsum("bhnd,bhd->bhn", qh, jnp.mean(kh, axis=2)) + 1e-6)
    scale = N ** -0.5
    kv = jnp.einsum("bhnd,bhne->bhde", krh * scale, vh * scale)
    attn = jnp.einsum("bhnd,bhde->bhne", qrh, kv) * z[..., None]
    attn = attn.transpose(0, 2, 1, 3).reshape(B, N, C)
    attn = attn + depthwise_conv3x3(v, H, W, p["lepe_w"], p["lepe_b"])

    x = shortcut + (attn * act_res) @ p["out_proj_w"] + p["out_proj_b"]
    x = x + depthwise_conv3x3(x, H, W, p["cpe2_w"], p["cpe2_b"])
    xn2 = _layernorm_ref(x, p["norm2_g"], p["norm2_b"])
    h = _gelu_tanh(xn2 @ p["fc1_w"] + p["fc1_b"])
    return x + (h @ p["fc2_w"] + p["fc2_b"])


# ----------------------------------------------------------------------------
# params + demo
# ----------------------------------------------------------------------------
def init_params(key, C, hidden):
    ks = jax.random.split(key, 22)

    def w(k, shape, s=0.1):
        return jax.random.normal(k, shape, dtype=jnp.float32) * s

    return {
        "cpe1_w": w(ks[0], (C, 1, 3, 3)),  "cpe1_b": w(ks[1], (C,), 0.02),
        "norm1_g": jnp.ones((C,), jnp.float32), "norm1_b": jnp.zeros((C,), jnp.float32),
        "in_proj_w": w(ks[2], (C, C)),     "in_proj_b": w(ks[3], (C,), 0.02),
        "act_proj_w": w(ks[4], (C, C)),    "act_proj_b": w(ks[5], (C,), 0.02),
        "dwc_w": w(ks[6], (C, 1, 3, 3)),   "dwc_b": w(ks[7], (C,), 0.02),
        "wq": w(ks[8], (C, C)),            "bq": w(ks[9], (C,), 0.02),
        "wk": w(ks[10], (C, C)),           "bk": w(ks[11], (C,), 0.02),
        "lepe_w": w(ks[12], (C, 1, 3, 3)), "lepe_b": w(ks[13], (C,), 0.02),
        "out_proj_w": w(ks[14], (C, C)),   "out_proj_b": w(ks[15], (C,), 0.02),
        "cpe2_w": w(ks[16], (C, 1, 3, 3)), "cpe2_b": w(ks[17], (C,), 0.02),
        "norm2_g": jnp.ones((C,), jnp.float32), "norm2_b": jnp.zeros((C,), jnp.float32),
        "fc1_w": w(ks[18], (C, hidden)),   "fc1_b": w(ks[19], (hidden,), 0.02),
        "fc2_w": w(ks[20], (hidden, C)),   "fc2_b": w(ks[21], (C,), 0.02),
    }


if __name__ == "__main__":
    # MLLABlock(dim=32, input_resolution=(16, 16), num_heads=4, mlp_ratio=4.0)
    B, H, W, C, num_heads = 2, 16, 16, 32, 4
    L = H * W
    hidden = int(C * 4.0)

    key = jax.random.PRNGKey(0)
    kx, kq, kp = jax.random.split(key, 3)
    x = jax.random.normal(kx, (B, L, C), dtype=jnp.float32)
    params = init_params(kp, C, hidden)
    (cos, sin), (cos_i, sin_i) = build_rope_tables(H, W, C)

    # 1) fused RoPE kernel vs. the module's RoPE math (tight tolerance)
    q_test = jax.random.normal(kq, (B, L, C), dtype=jnp.float32)
    rope_out = jax.block_until_ready(rope_pallas(q_test, cos_i, sin_i))
    rope_exp = rope_reference(q_test.reshape(B, H, W, C), cos, sin).reshape(B, L, C)
    assert jnp.allclose(rope_out, rope_exp, atol=1e-5, rtol=1e-5), "RoPE mismatch"

    # 2) full MLLABlock forward
    fwd = jax.jit(functools.partial(mlla_block_pallas, H=H, W=W, num_heads=num_heads))
    out = jax.block_until_ready(fwd(x, params, (cos_i, sin_i)))
    ref = mlla_block_reference(x, params, (cos, sin), H=H, W=W, num_heads=num_heads)
    assert out.shape == (B, L, C)
    max_err = float(jnp.max(jnp.abs(out - ref)))
    assert jnp.allclose(out, ref, atol=2e-2, rtol=2e-2), f"max abs err = {max_err}"
    print("KERNEL_OK")
</pallas_src>

<mosaic_0001>
module attributes {stable_mosaic.version = 11 : i64} {
  func.func @_rope_kernel(%arg0: i32, %arg1: i32, %arg2: memref<1x8x1024xf32, #tpu.memory_space<vmem>>, %arg3: memref<8x1024xf32, #tpu.memory_space<vmem>>, %arg4: memref<8x1024xf32, #tpu.memory_space<vmem>>, %arg5: memref<1x8x1024xf32, #tpu.memory_space<vmem>>) attributes {dimension_semantics = [#tpu.dimension_semantics<parallel>, #tpu.dimension_semantics<arbitrary>], iteration_bounds = array<i64: 1, 2>, scalar_prefetch = 0 : i64, scratch_operands = 0 : i64, tpu.core_type = #tpu.core_type<tc>, window_params = [{transform_indices = @transform_0, window_bounds = array<i64: 1, 8, 1024>}, {transform_indices = @transform_1, window_bounds = array<i64: 8, 1024>}, {transform_indices = @transform_2, window_bounds = array<i64: 8, 1024>}, {transform_indices = @transform_3, window_bounds = array<i64: 1, 8, 1024>}]} {
    %c0 = arith.constant 0 : index
    %c0_0 = arith.constant 0 : index
    %c0_1 = arith.constant 0 : index
    %0 = vector.load %arg2[%c0, %c0_0, %c0_1] : memref<1x8x1024xf32, #tpu.memory_space<vmem>>, vector<1x8x1024xf32>
    %c0_2 = arith.constant 0 : index
    %c0_3 = arith.constant 0 : index
    %1 = vector.load %arg3[%c0_2, %c0_3] : memref<8x1024xf32, #tpu.memory_space<vmem>>, vector<8x1024xf32>
    %c0_4 = arith.constant 0 : index
    %c0_5 = arith.constant 0 : index
    %2 = vector.load %arg4[%c0_4, %c0_5] : memref<8x1024xf32, #tpu.memory_space<vmem>>, vector<8x1024xf32>
    %3 = tpu.iota {dimensions = array<i32: 2>} : vector<1x8x1024xi32>
    %4 = vector.extract_strided_slice %0 {offsets = [0, 0, 1], sizes = [1, 8, 1023], strides = [1, 1, 1]} : vector<1x8x1024xf32> to vector<1x8x1023xf32>
    %5 = vector.extract_strided_slice %0 {offsets = [0, 0, 0], sizes = [1, 8, 1], strides = [1, 1, 1]} : vector<1x8x1024xf32> to vector<1x8x1xf32>
    %6 = tpu.concatenate %4, %5 in 2 : vector<1x8x1023xf32>, vector<1x8x1xf32> -> vector<1x8x1024xf32>
    %7 = vector.extract_strided_slice %0 {offsets = [0, 0, 1023], sizes = [1, 8, 1], strides = [1, 1, 1]} : vector<1x8x1024xf32> to vector<1x8x1xf32>
    %8 = vector.extract_strided_slice %0 {offsets = [0, 0, 0], sizes = [1, 8, 1023], strides = [1, 1, 1]} : vector<1x8x1024xf32> to vector<1x8x1023xf32>
    %9 = tpu.concatenate %7, %8 in 2 : vector<1x8x1xf32>, vector<1x8x1023xf32> -> vector<1x8x1024xf32>
    %c1_i32 = arith.constant 1 : i32
    %10 = vector.broadcast %c1_i32 : i32 to vector<1x8x1024xi32>
    %11 = arith.andi %3, %10 : vector<1x8x1024xi32>
    %c0_i32 = arith.constant 0 : i32
    %12 = vector.broadcast %c0_i32 : i32 to vector<1x8x1024xi32>
    %13 = arith.cmpi eq, %11, %12 : vector<1x8x1024xi32>
    %14 = arith.select %13, %6, %9 : vector<1x8x1024xi1>, vector<1x8x1024xf32>
    %15 = vector.shape_cast %1 : vector<8x1024xf32> to vector<1x8x1024xf32>
    %16 = arith.mulf %0, %15 : vector<1x8x1024xf32>
    %17 = vector.shape_cast %2 : vector<8x1024xf32> to vector<1x8x1024xf32>
    %18 = arith.mulf %14, %17 : vector<1x8x1024xf32>
    %19 = arith.addf %16, %18 : vector<1x8x1024xf32>
    %c0_6 = arith.constant 0 : index
    %c0_7 = arith.constant 0 : index
    %c0_8 = arith.constant 0 : index
    %20 = vector.load %arg5[%c0_6, %c0_7, %c0_8] : memref<1x8x1024xf32, #tpu.memory_space<vmem>>, vector<1x8x1024xf32>
    tpu.vector_store %arg5[%c0_6, %c0_7, %c0_8], %19 {strides = array<i32>} : memref<1x8x1024xf32, #tpu.memory_space<vmem>>, vector<1x8x1024xf32>,
    return
  }
  func.func @transform_0(%arg0: i32, %arg1: i32) -> (i32, i32, i32) {
    %c0_i32 = arith.constant 0 : i32
    %c0_i32_0 = arith.constant 0 : i32
    return %arg1, %arg0, %c0_i32 : i32, i32, i32
  }
  func.func @transform_1(%arg0: i32, %arg1: i32) -> (i32, i32) {
    %c0_i32 = arith.constant 0 : i32
    %c0_i32_0 = arith.constant 0 : i32
    return %arg0, %c0_i32 : i32, i32
  }
  func.func @transform_2(%arg0: i32, %arg1: i32) -> (i32, i32) {
    %c0_i32 = arith.constant 0 : i32
    %c0_i32_0 = arith.constant 0 : i32
    return %arg0, %c0_i32 : i32, i32
  }
  func.func @transform_3(%arg0: i32, %arg1: i32) -> (i32, i32, i32) {
    %c0_i32 = arith.constant 0 : i32
    %c0_i32_0 = arith.constant 0 : i32
    return %arg1, %arg0, %c0_i32 : i32, i32, i32
  }
}

</mosaic_0001>

<llo_original>
// kernel: tpu_custom_call.1
$region0: #{tpu_custom_call.1}
  #allocation0 [shape = 'u32[]', space=smem, size = 0x4, offset = 0x4, fixed_abs, tag = 'smem constant byte address 0x4 - core index']
  #allocation1 [shape = 'u32[144,128]{1,0:T(1,128)}', space=vmem, size = 0x12000, scoped, tag = 'internal scratch']
  %s0 = inlined_call_operand.hbm [shape: f32[2,8,1024], index: 0, kind: input, shape index: {}]
  %s1 = inlined_call_operand.hbm [shape: f32[8,1024], index: 1, kind: input, shape index: {}]
  %s2 = inlined_call_operand.hbm [shape: f32[8,1024], index: 2, kind: input, shape index: {}]
  %s3 = inlined_call_operand.hbm [shape: f32[2,8,1024], index: 3, kind: output, shape index: {}]
  %s4 = sld [smem:[#allocation0]]
  $region57: #{tpu_custom_call.1} parent=0
    _
  %s6 = ssub.s32 1, %s4
  %s7 = scalar_select 0, %s6, %s4
  $region1: #{tpu_custom_call.1} parent=0
    #allocation2 [shape = 'u8[65536]{0}', space=vmem, size = 0x10000, scoped, tag = 'input window, operand 0']
    #allocation3 [shape = 's32[2]{0}', space=sflag, size = 0x8, scoped, tag = 'scoped memory for tpu_custom_call.1']
    #allocation4 [shape = 's32[2]{0}', space=sflag, size = 0x8, scoped, tag = 'scoped memory for tpu_custom_call.1']
    #allocation5 [shape = 'u8[32768]{0}', space=vmem, size = 0x8000, scoped, tag = 'input window, operand 1, single buffered']
    #allocation6 [shape = 's32[1]{0}', space=sflag, size = 0x4, scoped, tag = 'scoped memory for tpu_custom_call.1']
    #allocation7 [shape = 'u8[32768]{0}', space=vmem, size = 0x8000, scoped, tag = 'input window, operand 2, single buffered']
    #allocation8 [shape = 'u8[65536]{0}', space=vmem, size = 0x10000, scoped, tag = 'output window, operand 0']
    %8 = vsyncpa [#allocation3], 0
    %s9 = scalar_lea.sflag [#allocation3], 1
    %10 = vsyncpa %s9, 0
    %11 = vsyncpa [#allocation6], 0
    %12 = vsyncpa [#allocation4], 0
    %s13 = scalar_lea.sflag [#allocation4], 1
    %14 = vsyncpa %s13, 0
    loop: start=0, step=1, limit=4
    $region2: #{tpu_custom_call.1} parent=1 // loop_pre_header
      _
    $region3: #{tpu_custom_call.1} parent=1 // loop_header
      %s16 = sphi 0, %s20
      %p17 = scmp.ge.s32.totalorder %s16, 4
      %s23 = sphi 0, %s35
      %s24 = sphi 0, %s31
      %s25 = sphi 0, %s23
      %s26 = sphi 0, %s24
      %s27 = sphi 0, %s25
      %s28 = sphi 0, %s26
      %s40 = sphi 0, %s42
      %s43 = sphi 0, %s40
      %s44 = sphi 0, %s43
      %s60 = sphi 0, %s44
      %s66 = sphi 0, %s68
      %s69 = sphi 0, %s66
      %s70 = sphi 0, %s69
      %s86 = sphi 0, %s70
      %s92 = sphi 0, %s94
      %s95 = sphi 0, %s92
      %s96 = sphi 0, %s95
      %s112 = sphi 0, %s96
      %s120 = sphi 0, %s122
      %s123 = sphi 0, %s120
      %s124 = sphi 0, %s123
      %s140 = sphi 0, %s124
    $region4: #{tpu_custom_call.1} parent=1 // loop_header_branch
      %19 = sbr.rel (%p17) target = $region8
    $region5: #{tpu_custom_call.1} parent=1 // loop_body
      %s21 = ssub.s32 %s16, 1
      %s22 = ssub.s32 %s16, 2
      %s29 = sadd.s32 1, %s24
      %p30 = scmp.ge.s32.totalorder %s29, 2
      %s31 = scalar_select %p30, 0, %s29
      %s32 = sadd.s32 1, %s23
      %s33 = scalar_select %p30, %s32, %s23
      %p34 = scmp.ge.s32.totalorder %s33, 1
      %s35 = scalar_select %p34, 0, %s33
      %s36 = ssub.s32 %s24, %s31
      %s37 = ssub.s32 %s23, %s35
      %s38 = sor.u32 %s36, %s37
      %p39 = scmp.eq.s32.totalorder %s38, 0
      %s41 = sadd.s32 %s40, 1
      %s42 = scalar_select %p39, %s40, %s41
      %p45 = pneg %p39
      %p46 = scmp.eq.s32.totalorder %s16, 1
      %p47 = por %p45, %p46
      %p48 = scmp.ne.s32.totalorder %s40, %s43
      %p49 = scmp.eq.s32.totalorder %s16, 0
      %p50 = por %p48, %p49
      %p51 = scmp.ne.s32.totalorder %s40, %s43
      %p52 = scmp.eq.s32.totalorder %s21, 1
      %p53 = por %p51, %p52
      %p54 = scmp.ne.s32.totalorder %s43, %s44
      %p55 = scmp.eq.s32.totalorder %s21, 0
      %p56 = por %p54, %p55
      %p57 = scmp.ne.s32.totalorder %s43, %s44
      %p58 = scmp.eq.s32.totalorder %s22, 1
      %p59 = por %p57, %p58
      %p61 = scmp.ne.s32.totalorder %s44, %s60
      %p62 = scmp.eq.s32.totalorder %s22, 0
      %p63 = por %p61, %p62
      %s64 = ssub.s32 %s23, %s35
      %p65 = scmp.eq.s32.totalorder %s64, 0
      %s67 = sadd.s32 %s66, 1
      %s68 = scalar_select %p65, %s66, %s67
      %p71 = pneg %p65
      %p72 = scmp.eq.s32.totalorder %s16, 1
      %p73 = por %p71, %p72
      %p74 = scmp.ne.s32.totalorder %s66, %s69
      %p75 = scmp.eq.s32.totalorder %s16, 0
      %p76 = por %p74, %p75
      %p77 = scmp.ne.s32.totalorder %s66, %s69
      %p78 = scmp.eq.s32.totalorder %s21, 1
      %p79 = por %p77, %p78
      %p80 = scmp.ne.s32.totalorder %s69, %s70
      %p81 = scmp.eq.s32.totalorder %s21, 0
      %p82 = por %p80, %p81
      %p83 = scmp.ne.s32.totalorder %s69, %s70
      %p84 = scmp.eq.s32.totalorder %s22, 1
      %p85 = por %p83, %p84
      %p87 = scmp.ne.s32.totalorder %s70, %s86
      %p88 = scmp.eq.s32.totalorder %s22, 0
      %p89 = por %p87, %p88
      %s90 = ssub.s32 %s23, %s35
      %p91 = scmp.eq.s32.totalorder %s90, 0
      %s93 = sadd.s32 %s92, 1
      %s94 = scalar_select %p91, %s92, %s93
      %p97 = pneg %p91
      %p98 = scmp.eq.s32.totalorder %s16, 1
      %p99 = por %p97, %p98
      %p100 = scmp.ne.s32.totalorder %s92, %s95
      %p101 = scmp.eq.s32.totalorder %s16, 0
      %p102 = por %p100, %p101
      %p103 = scmp.ne.s32.totalorder %s92, %s95
      %p104 = scmp.eq.s32.totalorder %s21, 1
      %p105 = por %p103, %p104
      %p106 = scmp.ne.s32.totalorder %s95, %s96
      %p107 = scmp.eq.s32.totalorder %s21, 0
      %p108 = por %p106, %p107
      %p109 = scmp.ne.s32.totalorder %s95, %s96
      %p110 = scmp.eq.s32.totalorder %s22, 1
      %p111 = por %p109, %p110
      %p113 = scmp.ne.s32.totalorder %s96, %s112
      %p114 = scmp.eq.s32.totalorder %s22, 0
      %p115 = por %p113, %p114
      %s116 = ssub.s32 %s24, %s31
      %s117 = ssub.s32 %s23, %s35
      %s118 = sor.u32 %s116, %s117
      %p119 = scmp.eq.s32.totalorder %s118, 0
      %s121 = sadd.s32 %s120, 1
      %s122 = scalar_select %p119, %s120, %s121
      %p125 = pneg %p119
      %p126 = scmp.eq.s32.totalorder %s16, 1
      %p127 = por %p125, %p126
      %p128 = scmp.ne.s32.totalorder %s120, %s123
      %p129 = scmp.eq.s32.totalorder %s16, 0
      %p130 = por %p128, %p129
      %p131 = scmp.ne.s32.totalorder %s120, %s123
      %p132 = scmp.eq.s32.totalorder %s21, 1
      %p133 = por %p131, %p132
      %p134 = scmp.ne.s32.totalorder %s123, %s124
      %p135 = scmp.eq.s32.totalorder %s21, 0
      %p136 = por %p134, %p135
      %p137 = scmp.ne.s32.totalorder %s123, %s124
      %p138 = scmp.eq.s32.totalorder %s22, 1
      %p139 = por %p137, %p138
      %p141 = scmp.ne.s32.totalorder %s124, %s140
      %p142 = scmp.eq.s32.totalorder %s22, 0
      %p143 = por %p141, %p142
      %p144 = scmp.le.s32.totalorder 1, %s16
      %p145 = scmp.lt.s32.totalorder %s16, 3
      %p146 = pnand %p144, %p145
      %p147 = pneg %p146
      // Predicated region
      $region9: #{tpu_custom_call.1} parent=5 // pred_check
        _
      $region10: #{tpu_custom_call.1} parent=5 // pred_check_branch
        %149 = sbr.rel (%p146) target = $region12
      $region11: #{tpu_custom_call.1} parent=5 // pred_region
        %s150 = ssub.s32 %s16, 1
        // Predicated region
        $region13: #{tpu_custom_call.1} parent=11 // pred_check
          %p151 = pneg %p82
        $region14: #{tpu_custom_call.1} parent=11 // pred_check_branch
          %153 = sbr.rel (%p151) target = $region16
        $region15: #{tpu_custom_call.1} parent=11 // pred_region
          %s155 = ssub.s32 1024, 1024
          %156 = vsyncadd [#allocation6], %s155
          %s157 = smul.addr %s25, 8
          %s158 = smul.addr %s157, 128
          %s159 = scalar_lea.hbm %s1, %s158
          %s161 = sshll.u32 [#allocation5], 4
          %s162 = int_to_ptr.vmem [resolvable:$true] %s161
          %164 = dma.hbm_to_vmem [thread:$0]  %s159, 1024, %s162, [#allocation6]
        $region16: #{tpu_custom_call.1} parent=11 // pred_fallthru
          _
        // Predicated region
        $region17: #{tpu_custom_call.1} parent=11 // pred_check
          %p165 = pneg %p108
        $region18: #{tpu_custom_call.1} parent=11 // pred_check_branch
          %167 = sbr.rel (%p165) target = $region20
        $region19: #{tpu_custom_call.1} parent=11 // pred_region
          %s169 = ssub.s32 1024, 1024
          %170 = vsyncadd [#allocation6], %s169
          %s171 = smul.addr %s25, 8
          %s172 = smul.addr %s171, 128
          %s173 = scalar_lea.hbm %s2, %s172
          %s175 = sshll.u32 [#allocation7], 4
          %s176 = int_to_ptr.vmem [resolvable:$true] %s175
          %178 = dma.hbm_to_vmem [thread:$0]  %s173, 1024, %s176, [#allocation6]
        $region20: #{tpu_custom_call.1} parent=11 // pred_fallthru
          _
      $region12: #{tpu_custom_call.1} parent=5 // pred_fallthru
        _
      %p179 = scmp.lt.s32.totalorder %s16, 2
      // Predicated region
      $region21: #{tpu_custom_call.1} parent=5 // pred_check
        %p180 = pneg %p179
      $region22: #{tpu_custom_call.1} parent=5 // pred_check_branch
        %182 = sbr.rel (%p180) target = $region24
      $region23: #{tpu_custom_call.1} parent=5 // pred_region
        // Predicated region
        $region25: #{tpu_custom_call.1} parent=23 // pred_check
          %p183 = pneg %p50
        $region26: #{tpu_custom_call.1} parent=23 // pred_check_branch
          %185 = sbr.rel (%p183) target = $region28
        $region27: #{tpu_custom_call.1} parent=23 // pred_region
          %s186 = sand.u32 %s40, 1
          %s187 = scalar_lea.sflag [#allocation3], %s186
          %s188 = sand.u32 %s40, 1
          %s189 = smul.addr %s188, 64
          %s190 = scalar_lea.vmem [#allocation2], %s189
          %s192 = ssub.s32 1024, 1024
          %193 = vsyncadd %s187, %s192
          %s194 = smul.addr %s23, 8
          %s195 = smul.addr %s24, 8
          %s196 = sadd.s32 %s194, %s195
          %s197 = smul.addr %s196, 128
          %s198 = scalar_lea.hbm %s0, %s197
          %s200 = sshll.u32 %s190, 4
          %s201 = int_to_ptr.vmem [resolvable:$true] %s200
          %203 = dma.hbm_to_vmem [thread:$0]  %s198, 1024, %s201, %s187
        $region28: #{tpu_custom_call.1} parent=23 // pred_fallthru
          _
      $region24: #{tpu_custom_call.1} parent=5 // pred_fallthru
        _
      %p204 = scmp.le.s32.totalorder 1, %s16
      %p205 = scmp.lt.s32.totalorder %s16, 3
      %p206 = pnand %p204, %p205
      %p207 = pneg %p206
      // Predicated region
      $region29: #{tpu_custom_call.1} parent=5 // pred_check
        _
      $region30: #{tpu_custom_call.1} parent=5 // pred_check_branch
        %209 = sbr.rel (%p206) target = $region32
      $region31: #{tpu_custom_call.1} parent=5 // pred_region
        %s210 = ssub.s32 %s16, 1
        %s211 = sand.u32 %s43, 1
        %s212 = scalar_lea.sflag [#allocation3], %s211
        %s213 = sand.u32 %s43, 1
        %s214 = smul.addr %s213, 64
        %s215 = scalar_lea.vmem [#allocation2], %s214
        // Predicated region
        $region33: #{tpu_custom_call.1} parent=31 // pred_check
          %p216 = pneg %p56
        $region34: #{tpu_custom_call.1} parent=31 // pred_check_branch
          %218 = sbr.rel (%p216) target = $region36
        $region35: #{tpu_custom_call.1} parent=31 // pred_region
          %219 = dma.done %s212, 1024
        $region36: #{tpu_custom_call.1} parent=31 // pred_fallthru
          _
        // Predicated region
        $region37: #{tpu_custom_call.1} parent=31 // pred_check
          %p220 = pneg %p82
        $region38: #{tpu_custom_call.1} parent=31 // pred_check_branch
          %222 = sbr.rel (%p220) target = $region40
        $region39: #{tpu_custom_call.1} parent=31 // pred_region
          %223 = dma.done [#allocation6], 1024
        $region40: #{tpu_custom_call.1} parent=31 // pred_fallthru
          _
        // Predicated region
        $region41: #{tpu_custom_call.1} parent=31 // pred_check
          %p224 = pneg %p108
        $region42: #{tpu_custom_call.1} parent=31 // pred_check_branch
          %226 = sbr.rel (%p224) target = $region44
        $region43: #{tpu_custom_call.1} parent=31 // pred_region
          %227 = dma.done [#allocation6], 1024
        $region44: #{tpu_custom_call.1} parent=31 // pred_fallthru
          _
        %s228 = sand.u32 %s43, 1
        %s229 = scalar_lea.sflag [#allocation3], %s228
        %s230 = sand.u32 %s43, 1
        %s231 = smul.addr %s230, 64
        %s232 = scalar_lea.vmem [#allocation2], %s231
        %p233 = pneg %p56
        %p234 = pneg %p53
        %p235 = pneg %p82
        %p236 = pneg %p79
        %p237 = pneg %p108
        %p238 = pneg %p105
        %p239 = pneg %p136
        %p240 = pneg %p133
        %s241 = sand.u32 %s123, 1
        %s242 = scalar_lea.sflag [#allocation4], %s241
        %s243 = sand.u32 %s123, 1
        %s244 = smul.addr %s243, 64
        %s245 = scalar_lea.vmem [#allocation8], %s244
        %v246 = vld [vmem:[%s215] sm:$0xff]
        %v247 = vld [vmem:[%s215 + $0x8] sm:$0xff]
        %v248 = vld [vmem:[%s215 + $0x10] sm:$0xff]
        %v249 = vld [vmem:[%s215 + $0x18] sm:$0xff]
        %v250 = vld [vmem:[%s215 + $0x20] sm:$0xff]
        %v251 = vld [vmem:[%s215 + $0x28] sm:$0xff]
        %v252 = vld [vmem:[%s215 + $0x30] sm:$0xff]
        %v253 = vld [vmem:[%s215 + $0x38] sm:$0xff]
        %v254 = vld [vmem:[#allocation5] sm:$0xff]
        %v255 = vld [vmem:[#allocation5 + $0x8] sm:$0xff]
        %v256 = vld [vmem:[#allocation5 + $0x10] sm:$0xff]
        %v257 = vld [vmem:[#allocation5 + $0x18] sm:$0xff]
        %v258 = vld [vmem:[#allocation5 + $0x20] sm:$0xff]
        %v259 = vld [vmem:[#allocation5 + $0x28] sm:$0xff]
        %v260 = vld [vmem:[#allocation5 + $0x30] sm:$0xff]
        %v261 = vld [vmem:[#allocation5 + $0x38] sm:$0xff]
        %v262 = vld [vmem:[#allocation7] sm:$0xff]
        %v263 = vld [vmem:[#allocation7 + $0x8] sm:$0xff]
        %v264 = vld [vmem:[#allocation7 + $0x10] sm:$0xff]
        %v265 = vld [vmem:[#allocation7 + $0x18] sm:$0xff]
        %v266 = vld [vmem:[#allocation7 + $0x20] sm:$0xff]
        %v267 = vld [vmem:[#allocation7 + $0x28] sm:$0xff]
        %v268 = vld [vmem:[#allocation7 + $0x30] sm:$0xff]
        %v269 = vld [vmem:[#allocation7 + $0x38] sm:$0xff]
        %v270 = vlaneseq
        %v271 = vand.u32 %v270, 127
        %v272 = vadd.s32 %v271, 128
        %v273 = vadd.s32 %v271, 256
        %v274 = vadd.s32 %v271, 384
        %v275 = vadd.s32 %v271, 512
        %v276 = vadd.s32 %v271, 640
        %v277 = vadd.s32 %v271, 768
        %v278 = vadd.s32 %v271, 896
        %287 = vrot.lane.b32.xlu0 %v246, 127
        %v288 = vpop.permute.xlu0 %287
        %289 = vrot.lane.b32.xlu0 %v247, 127
        %v290 = vpop.permute.xlu0 %289
        %291 = vrot.lane.b32.xlu0 %v248, 127
        %v292 = vpop.permute.xlu0 %291
        %293 = vrot.lane.b32.xlu0 %v249, 127
        %v294 = vpop.permute.xlu0 %293
        %295 = vrot.lane.b32.xlu0 %v250, 127
        %v296 = vpop.permute.xlu0 %295
        %297 = vrot.lane.b32.xlu0 %v251, 127
        %v298 = vpop.permute.xlu0 %297
        %299 = vrot.lane.b32.xlu0 %v252, 127
        %v300 = vpop.permute.xlu0 %299
        %301 = vrot.lane.b32.xlu0 %v253, 127
        %v302 = vpop.permute.xlu0 %301
        %vm303 = vcmask 1039360
        %v304 = vsel %vm303, %v288, %v290
        %v305 = vsel %vm303, %v290, %v292
        %v306 = vsel %vm303, %v292, %v294
        %v307 = vsel %vm303, %v294, %v296
        %v308 = vsel %vm303, %v296, %v298
        %v309 = vsel %vm303, %v298, %v300
        %v310 = vsel %vm303, %v300, %v302
        %v320 = vsel %vm303, %v302, %v288
        %321 = vrot.lane.b32.xlu0 %v253, 1
        %v322 = vpop.permute.xlu0 %321
        %324 = vrot.lane.b32.xlu0 %v246, 1
        %v325 = vpop.permute.xlu0 %324
        %326 = vrot.lane.b32.xlu0 %v247, 1
        %v327 = vpop.permute.xlu0 %326
        %328 = vrot.lane.b32.xlu0 %v248, 1
        %v329 = vpop.permute.xlu0 %328
        %330 = vrot.lane.b32.xlu0 %v249, 1
        %v331 = vpop.permute.xlu0 %330
        %332 = vrot.lane.b32.xlu0 %v250, 1
        %v333 = vpop.permute.xlu0 %332
        %334 = vrot.lane.b32.xlu0 %v251, 1
        %v335 = vpop.permute.xlu0 %334
        %336 = vrot.lane.b32.xlu0 %v252, 1
        %v337 = vpop.permute.xlu0 %336
        %vm338 = vcmask 7168
        %v339 = vsel %vm338, %v325, %v327
        %v340 = vsel %vm338, %v327, %v329
        %v341 = vsel %vm338, %v329, %v331
        %v342 = vsel %vm338, %v331, %v333
        %v343 = vsel %vm338, %v333, %v335
        %v344 = vsel %vm338, %v335, %v337
        %v345 = vsel %vm338, %v337, %v322
        %v354 = vsel %vm338, %v322, %v325
        %v355 = vand.u32 %v271, 1
        %v356 = vand.u32 %v272, 1
        %v357 = vand.u32 %v273, 1
        %v358 = vand.u32 %v274, 1
        %v359 = vand.u32 %v275, 1
        %v360 = vand.u32 %v276, 1
        %v361 = vand.u32 %v277, 1
        %v362 = vand.u32 %v278, 1
        %vm363 = vcmp.eq.s32.totalorder %v355, 0
        %vm364 = vcmp.eq.s32.totalorder %v356, 0
        %vm365 = vcmp.eq.s32.totalorder %v357, 0
        %vm366 = vcmp.eq.s32.totalorder %v358, 0
        %vm367 = vcmp.eq.s32.totalorder %v359, 0
        %vm368 = vcmp.eq.s32.totalorder %v360, 0
        %vm369 = vcmp.eq.s32.totalorder %v361, 0
        %vm370 = vcmp.eq.s32.totalorder %v362, 0
        %v371 = vsel %vm363, %v304, %v354
        %v372 = vsel %vm364, %v305, %v339
        %v373 = vsel %vm365, %v306, %v340
        %v374 = vsel %vm366, %v307, %v341
        %v375 = vsel %vm367, %v308, %v342
        %v376 = vsel %vm368, %v309, %v343
        %v377 = vsel %vm369, %v310, %v344
        %v378 = vsel %vm370, %v320, %v345
        %v379 = vmul.f32 %v246, %v254
        %v380 = vmul.f32 %v247, %v255
        %v381 = vmul.f32 %v248, %v256
        %v382 = vmul.f32 %v249, %v257
        %v383 = vmul.f32 %v250, %v258
        %v384 = vmul.f32 %v251, %v259
        %v385 = vmul.f32 %v252, %v260
        %v386 = vmul.f32 %v253, %v261
        %v387 = vmul.f32 %v371, %v262
        %v388 = vmul.f32 %v372, %v263
        %v389 = vmul.f32 %v373, %v264
        %v390 = vmul.f32 %v374, %v265
        %v391 = vmul.f32 %v375, %v266
        %v392 = vmul.f32 %v376, %v267
        %v393 = vmul.f32 %v377, %v268
        %v394 = vmul.f32 %v378, %v269
        %v395 = vadd.f32 %v379, %v387
        %v396 = vadd.f32 %v380, %v388
        %v397 = vadd.f32 %v381, %v389
        %v398 = vadd.f32 %v382, %v390
        %v399 = vadd.f32 %v383, %v391
        %v400 = vadd.f32 %v384, %v392
        %v401 = vadd.f32 %v385, %v393
        %v402 = vadd.f32 %v386, %v394
        %403 = vst [vmem:[%s245] sm:$0xff] %v395
        %404 = vst [vmem:[%s245 + $0x8] sm:$0xff] %v396
        %405 = vst [vmem:[%s245 + $0x10] sm:$0xff] %v397
        %406 = vst [vmem:[%s245 + $0x18] sm:$0xff] %v398
        %407 = vst [vmem:[%s245 + $0x20] sm:$0xff] %v399
        %408 = vst [vmem:[%s245 + $0x28] sm:$0xff] %v400
        %409 = vst [vmem:[%s245 + $0x30] sm:$0xff] %v401
        %410 = vst [vmem:[%s245 + $0x38] sm:$0xff] %v402
        %s411 = sand.u32 %s123, 1
        %s412 = scalar_lea.sflag [#allocation4], %s411
        %s413 = sand.u32 %s123, 1
        %s414 = smul.addr %s413, 64
        %s415 = scalar_lea.vmem [#allocation8], %s414
        // Predicated region
        $region45: #{tpu_custom_call.1} parent=31 // pred_check
          %p416 = pneg %p133
        $region46: #{tpu_custom_call.1} parent=31 // pred_check_branch
          %418 = sbr.rel (%p416) target = $region48
        $region47: #{tpu_custom_call.1} parent=31 // pred_region
          %s420 = ssub.s32 1024, 1024
          %421 = vsyncadd %s412, %s420
          %s422 = smul.addr %s25, 8
          %s423 = smul.addr %s26, 8
          %s424 = sadd.s32 %s422, %s423
          %s425 = smul.addr %s424, 128
          %s426 = scalar_lea.hbm %s3, %s425
          %s428 = sshll.u32 %s415, 4
          %s429 = int_to_ptr.vmem [resolvable:$true] %s428
          %431 = dma.vmem_to_hbm [thread:$0]  %s429, 1024, %s426, %s412
        $region48: #{tpu_custom_call.1} parent=31 // pred_fallthru
          _
      $region32: #{tpu_custom_call.1} parent=5 // pred_fallthru
        _
      %p432 = scmp.le.s32.totalorder 2, %s16
      // Predicated region
      $region49: #{tpu_custom_call.1} parent=5 // pred_check
        %p433 = pneg %p432
      $region50: #{tpu_custom_call.1} parent=5 // pred_check_branch
        %435 = sbr.rel (%p433) target = $region52
      $region51: #{tpu_custom_call.1} parent=5 // pred_region
        %s436 = ssub.s32 %s16, 2
        // Predicated region
        $region53: #{tpu_custom_call.1} parent=51 // pred_check
          %p437 = pneg %p139
        $region54: #{tpu_custom_call.1} parent=51 // pred_check_branch
          %439 = sbr.rel (%p437) target = $region56
        $region55: #{tpu_custom_call.1} parent=51 // pred_region
          %s440 = sand.u32 %s124, 1
          %s441 = scalar_lea.sflag [#allocation4], %s440
          %s442 = sand.u32 %s124, 1
          %s443 = smul.addr %s442, 64
          %s444 = scalar_lea.vmem [#allocation8], %s443
          %445 = dma.done %s441, 1024
        $region56: #{tpu_custom_call.1} parent=51 // pred_fallthru
          _
      $region52: #{tpu_custom_call.1} parent=5 // pred_fallthru
        _
    $region6: #{tpu_custom_call.1} parent=1 // loop_footer
      %s20 = sadd.s32 1, %s16
    $region7: #{tpu_custom_call.1} parent=1 // loop_footer_branch
      %15 = sbr.rel target = $region3
    $region8: #{tpu_custom_call.1} parent=1 // loop_exit
      _
    %446 = vsyncpa [#allocation3], 1
    %s447 = scalar_lea.sflag [#allocation3], 1
    %448 = vsyncpa %s447, 1
    %449 = vsyncpa [#allocation6], 1
    %450 = vsyncpa [#allocation4], 1
    %s451 = scalar_lea.sflag [#allocation4], 1
    %452 = vsyncpa %s451, 1

</llo_original>
